<compile_context>
chip_gen: v6e
topology: v6e:2x2x1
jax: 0.10.0
libtpu: 0.0.40
codegen_flags: <defaults>
</compile_context>

<pallas_src>
import jax
import jax.numpy as jnp
from jax.experimental import pallas as pl
from jax.experimental.pallas import tpu as pltpu


def _round_up(x, m):
    return ((x + m - 1) // m) * m


def _make_mlp_kernel(num_linear):
    """Fused MLP kernel: num_linear Linear layers, ReLU between all but the last."""

    def kernel(*refs):
        # refs = (x_ref, w0, b0, w1, b1, ..., w_{L-1}, b_{L-1}, o_ref)
        x_ref = refs[0]
        o_ref = refs[-1]
        h = x_ref[...]                                    # input dtype (f32 or bf16)
        for i in range(num_linear):
            w = refs[1 + 2 * i][...]                      # (in, out), storage dtype
            b = refs[2 + 2 * i][...].astype(jnp.float32)  # (1, out) -> f32
            # MXU matmul, f32 accumulation; h stays f32 between layers.
            h = jnp.dot(h, w, preferred_element_type=jnp.float32) + b
            if i < num_linear - 1:                        # ReLU on hidden layers only
                h = jnp.maximum(h, 0.0)
        o_ref[...] = h.astype(o_ref.dtype)

    return kernel


def _fold_params(params, fold):
    """fold-way block-diagonal weights + tiled biases (exact; zero blocks contribute 0)."""
    if fold == 1:
        return list(params)
    folded = []
    for w, b in params:
        eye = jnp.eye(fold, dtype=w.dtype)
        folded.append((jnp.kron(eye, w), jnp.tile(b, (1, fold))))
    return folded


def latent_discriminator_forward(lv, params, *, fold=4, tile_rows=8192,
                                 two_core_min_rows=2048,
                                 vmem_limit_bytes=48 * 1024 * 1024):
    """lv: (batch, z_dim).  params: list of (W_t (in, out), b (1, out)) per Linear layer.

    Folds `fold` batch rows per lane-row (lane-dense activations + block-diag weights),
    then streams the folded batch axis in `tile_rows`-row blocks.  No padding: ragged
    tiles are masked by Pallas.  Weights stay VMEM-resident across all grid steps.
    """
    num_linear = len(params)
    batch, in_dim = lv.shape
    out_dim = params[-1][0].shape[1]

    # --- lane-dense folding: (B, in) -> (B/fold, fold*in), block-diag weights ---
    while fold > 1 and batch % fold:
        fold //= 2
    fparams = _fold_params(params, fold)
    folded_rows = batch // fold
    f_in = fold * in_dim
    f_out = fold * out_dim
    x = lv.reshape(folded_rows, f_in)        # free row-major metadata reshape

    # --- batch-tile selection (dtype-aware sublane alignment; no padding) ---
    itemsize = jnp.dtype(lv.dtype).itemsize
    sub = 8 * max(1, 4 // itemsize)          # 8 (f32), 16 (bf16), 32 (int8/fp8)
    tile_rows = max(sub, _round_up(tile_rows, sub))
    if folded_rows <= tile_rows:
        if folded_rows >= max(two_core_min_rows, 2 * sub):
            # >= 2 grid steps so ("parallel",) shards across v7x's 2 TensorCores
            # and DMA/compute overlap exists; no effect on v5e/v6e (1 TC).
            tb = _round_up(-(-folded_rows // 2), sub)
        else:
            tb = folded_rows                 # single full-extent block (always legal)
    else:
        tb = tile_rows
    grid = (pl.cdiv(folded_rows, tb),)       # ragged last block masked by Pallas

    kernel = _make_mlp_kernel(num_linear)

    # Activations / output: streamed over the batch grid axis (feature axis full-extent,
    # lane-dense after folding -> unmasked vst stores).
    act_spec = pl.BlockSpec((tb, f_in), lambda i: (i, 0))
    out_spec = pl.BlockSpec((tb, f_out), lambda i: (i, 0))
    # Weights / biases: full-shape blocks, constant index_map -> VMEM-resident.
    param_specs = []
    flat = []
    for w, b in fparams:
        flat.extend([w, b])
        param_specs.append(pl.BlockSpec(w.shape, lambda i: (0, 0)))
        param_specs.append(pl.BlockSpec(b.shape, lambda i: (0, 0)))

    # Advisory cost estimate for XLA's scheduler (actual sizes, no padding).
    flops = 2 * batch * sum(w.shape[0] * w.shape[1] for w, _ in params)
    bytes_accessed = (
        lv.size * itemsize
        + batch * out_dim * itemsize
        + sum(w.size * w.dtype.itemsize + b.size * b.dtype.itemsize for w, b in fparams)
    )
    cost = pl.CostEstimate(flops=flops, transcendentals=0, bytes_accessed=bytes_accessed)

    out = pl.pallas_call(
        kernel,
        out_shape=jax.ShapeDtypeStruct((folded_rows, f_out), lv.dtype),
        grid=grid,
        in_specs=[act_spec] + param_specs,
        out_specs=out_spec,
        compiler_params=pltpu.CompilerParams(
            dimension_semantics=("parallel",),   # batch tiles shard across TCs on v7x
            vmem_limit_bytes=vmem_limit_bytes,   # under v7x's 64 MiB physical VMEM
        ),
        cost_estimate=cost,
    )(x, *flat)

    return out.reshape(batch, out_dim)           # free metadata reshape back


def init_params(key, z_dim, num_layers, n_attr, n_classes, dtype=jnp.float32):
    """Deterministic init matching the module's layer shapes (PyTorch-style uniform bounds)."""
    dims = []
    d = z_dim
    for _ in range(num_layers - 1):
        dims.append((d, d // 2))
        d = d // 2
    dims.append((d, n_attr * n_classes))

    params = []
    for (fan_in, fan_out) in dims:
        key, kw, kb = jax.random.split(key, 3)
        bound = 1.0 / jnp.sqrt(jnp.float32(fan_in))
        # Stored already transposed: (in_features, out_features).
        w_t = jax.random.uniform(kw, (fan_in, fan_out), jnp.float32, -bound, bound).astype(dtype)
        b = jax.random.uniform(kb, (1, fan_out), jnp.float32, -bound, bound).astype(dtype)
        params.append((w_t, b))
    return params


def reference_forward(lv, params):
    """Pure-JAX reference mirroring the kernel's accumulation (f32 accumulator)."""
    h = lv
    for i, (w, b) in enumerate(params):
        h = jnp.dot(h, w, preferred_element_type=jnp.float32) + b.astype(jnp.float32)
        if i < len(params) - 1:
            h = jnp.maximum(h, 0.0)
    return h


if __name__ == "__main__":
    # Synthetic config (mirrors the module's __init__):
    #   model.latent_size = 32, model.num_layers = 3,
    #   data.num_attributes = 4, model.num_classes = 8,
    #   discriminator.num_layers = 2  (satisfies the assert)
    z_dim, num_layers, n_attr, n_classes = 32, 3, 4, 8
    out_dim = n_attr * n_classes

    key = jax.random.PRNGKey(0)
    key, kp = jax.random.split(key)
    params = init_params(kp, z_dim, num_layers, n_attr, n_classes, dtype=jnp.float32)

    def check(out, lv_in, prm, atol=1e-5, rtol=1e-5):
        ref = reference_forward(lv_in, prm)
        assert out.shape == (lv_in.shape[0], out_dim)
        assert jnp.allclose(out.astype(jnp.float32), ref.astype(jnp.float32),
                            atol=atol, rtol=rtol)

    # 1) tiny batch (fold falls back to 2), single full-extent block, f32
    key, k1 = jax.random.split(key)
    lv1 = jax.random.normal(k1, (2, z_dim), jnp.float32)
    out1 = jax.block_until_ready(latent_discriminator_forward(lv1, params))
    check(out1, lv1, params)

    # 2) fold=4 lane-dense path (128->64->32->128), single block, f32
    key, k2 = jax.random.split(key)
    lv2 = jax.random.normal(k2, (16, z_dim), jnp.float32)
    out2 = jax.block_until_ready(latent_discriminator_forward(lv2, params))
    check(out2, lv2, params)

    # 3) streamed batch grid with a ragged (masked) last block: 20 folded rows, tile 8 -> 3 steps
    key, k3 = jax.random.split(key)
    lv3 = jax.random.normal(k3, (80, z_dim), jnp.float32)
    out3 = jax.block_until_ready(latent_discriminator_forward(lv3, params, tile_rows=8))
    check(out3, lv3, params)

    # 4) small-batch 2-way split path (v7x dual-TC sharding) with a ragged second block
    out4 = jax.block_until_ready(
        latent_discriminator_forward(lv3, params, two_core_min_rows=8))
    check(out4, lv3, params)

    # 5) bf16 streaming: fold=4, 16-row (bf16-pack-aligned) tiles, 2 grid steps,
    #    f32 accumulation inside the kernel.
    params_bf16 = [(w.astype(jnp.bfloat16), b.astype(jnp.bfloat16)) for w, b in params]
    key, k5 = jax.random.split(key)
    lv5 = jax.random.normal(k5, (128, z_dim), jnp.float32).astype(jnp.bfloat16)
    out5 = jax.block_until_ready(
        latent_discriminator_forward(lv5, params_bf16, tile_rows=16))
    ref5 = reference_forward(lv5, params_bf16)
    assert out5.shape == (128, out_dim)
    assert jnp.allclose(out5.astype(jnp.float32), ref5.astype(jnp.float32),
                        atol=5e-2, rtol=5e-2)

    print("KERNEL_OK")
</pallas_src>

<mosaic_0001>
module attributes {stable_mosaic.version = 11 : i64} {
  func.func @kernel(%arg0: i32, %arg1: memref<1x64xf32, #tpu.memory_space<vmem>>, %arg2: memref<64x32xf32, #tpu.memory_space<vmem>>, %arg3: memref<1x32xf32, #tpu.memory_space<vmem>>, %arg4: memref<32x16xf32, #tpu.memory_space<vmem>>, %arg5: memref<1x16xf32, #tpu.memory_space<vmem>>, %arg6: memref<16x64xf32, #tpu.memory_space<vmem>>, %arg7: memref<1x64xf32, #tpu.memory_space<vmem>>, %arg8: memref<1x64xf32, #tpu.memory_space<vmem>>) attributes {dimension_semantics = [#tpu.dimension_semantics<parallel>], iteration_bounds = array<i64: 1>, scalar_prefetch = 0 : i64, scratch_operands = 0 : i64, tpu.core_type = #tpu.core_type<tc>, window_params = [{transform_indices = @transform_0, window_bounds = array<i64: 1, 64>}, {pipeline_mode = #tpu.pipeline_mode<synchronous>, transform_indices = @transform_1, window_bounds = array<i64: 64, 32>}, {pipeline_mode = #tpu.pipeline_mode<synchronous>, transform_indices = @transform_2, window_bounds = array<i64: 1, 32>}, {pipeline_mode = #tpu.pipeline_mode<synchronous>, transform_indices = @transform_3, window_bounds = array<i64: 32, 16>}, {pipeline_mode = #tpu.pipeline_mode<synchronous>, transform_indices = @transform_4, window_bounds = array<i64: 1, 16>}, {pipeline_mode = #tpu.pipeline_mode<synchronous>, transform_indices = @transform_5, window_bounds = array<i64: 16, 64>}, {pipeline_mode = #tpu.pipeline_mode<synchronous>, transform_indices = @transform_6, window_bounds = array<i64: 1, 64>}, {transform_indices = @transform_7, window_bounds = array<i64: 1, 64>}]} {
    %c0 = arith.constant 0 : index
    %c0_0 = arith.constant 0 : index
    %0 = vector.load %arg1[%c0, %c0_0] : memref<1x64xf32, #tpu.memory_space<vmem>>, vector<1x64xf32>
    %c0_1 = arith.constant 0 : index
    %c0_2 = arith.constant 0 : index
    %1 = vector.load %arg2[%c0_1, %c0_2] : memref<64x32xf32, #tpu.memory_space<vmem>>, vector<64x32xf32>
    %c0_3 = arith.constant 0 : index
    %c0_4 = arith.constant 0 : index
    %2 = vector.load %arg3[%c0_3, %c0_4] : memref<1x32xf32, #tpu.memory_space<vmem>>, vector<1x32xf32>
    %cst = arith.constant dense<0.000000e+00> : vector<1x32xf32>
    %3 = tpu.matmul %0, %1, %cst {dimension_numbers = #tpu.dot_dimension_numbers<[1], [0], [0], [1], [0, 0, 1, 1], [], []>} : vector<1x64xf32>, vector<64x32xf32>, vector<1x32xf32> -> vector<1x32xf32>
    %4 = arith.addf %3, %2 : vector<1x32xf32>
    %cst_5 = arith.constant 0.000000e+00 : f32
    %5 = vector.broadcast %cst_5 : f32 to vector<1x32xf32>
    %6 = arith.maximumf %4, %5 : vector<1x32xf32>
    %c0_6 = arith.constant 0 : index
    %c0_7 = arith.constant 0 : index
    %7 = vector.load %arg4[%c0_6, %c0_7] : memref<32x16xf32, #tpu.memory_space<vmem>>, vector<32x16xf32>
    %c0_8 = arith.constant 0 : index
    %c0_9 = arith.constant 0 : index
    %8 = vector.load %arg5[%c0_8, %c0_9] : memref<1x16xf32, #tpu.memory_space<vmem>>, vector<1x16xf32>
    %cst_10 = arith.constant dense<0.000000e+00> : vector<1x16xf32>
    %9 = tpu.matmul %6, %7, %cst_10 {dimension_numbers = #tpu.dot_dimension_numbers<[1], [0], [0], [1], [0, 0, 1, 1], [], []>} : vector<1x32xf32>, vector<32x16xf32>, vector<1x16xf32> -> vector<1x16xf32>
    %10 = arith.addf %9, %8 : vector<1x16xf32>
    %cst_11 = arith.constant 0.000000e+00 : f32
    %11 = vector.broadcast %cst_11 : f32 to vector<1x16xf32>
    %12 = arith.maximumf %10, %11 : vector<1x16xf32>
    %c0_12 = arith.constant 0 : index
    %c0_13 = arith.constant 0 : index
    %13 = vector.load %arg6[%c0_12, %c0_13] : memref<16x64xf32, #tpu.memory_space<vmem>>, vector<16x64xf32>
    %c0_14 = arith.constant 0 : index
    %c0_15 = arith.constant 0 : index
    %14 = vector.load %arg7[%c0_14, %c0_15] : memref<1x64xf32, #tpu.memory_space<vmem>>, vector<1x64xf32>
    %cst_16 = arith.constant dense<0.000000e+00> : vector<1x64xf32>
    %15 = tpu.matmul %12, %13, %cst_16 {dimension_numbers = #tpu.dot_dimension_numbers<[1], [0], [0], [1], [0, 0, 1, 1], [], []>} : vector<1x16xf32>, vector<16x64xf32>, vector<1x64xf32> -> vector<1x64xf32>
    %16 = arith.addf %15, %14 : vector<1x64xf32>
    %c0_17 = arith.constant 0 : index
    %c0_18 = arith.constant 0 : index
    %17 = vector.load %arg8[%c0_17, %c0_18] : memref<1x64xf32, #tpu.memory_space<vmem>>, vector<1x64xf32>
    tpu.vector_store %arg8[%c0_17, %c0_18], %16 {strides = array<i32>} : memref<1x64xf32, #tpu.memory_space<vmem>>, vector<1x64xf32>,
    return
  }
  func.func @transform_0(%arg0: i32) -> (i32, i32) {
    %c0_i32 = arith.constant 0 : i32
    %c0_i32_0 = arith.constant 0 : i32
    return %arg0, %c0_i32 : i32, i32
  }
  func.func @transform_1(%arg0: i32) -> (i32, i32) {
    %c0_i32 = arith.constant 0 : i32
    %c0_i32_0 = arith.constant 0 : i32
    %c0_i32_1 = arith.constant 0 : i32
    return %c0_i32, %c0_i32_0 : i32, i32
  }
  func.func @transform_2(%arg0: i32) -> (i32, i32) {
    %c0_i32 = arith.constant 0 : i32
    %c0_i32_0 = arith.constant 0 : i32
    %c0_i32_1 = arith.constant 0 : i32
    return %c0_i32, %c0_i32_0 : i32, i32
  }
  func.func @transform_3(%arg0: i32) -> (i32, i32) {
    %c0_i32 = arith.constant 0 : i32
    %c0_i32_0 = arith.constant 0 : i32
    %c0_i32_1 = arith.constant 0 : i32
    return %c0_i32, %c0_i32_0 : i32, i32
  }
  func.func @transform_4(%arg0: i32) -> (i32, i32) {
    %c0_i32 = arith.constant 0 : i32
    %c0_i32_0 = arith.constant 0 : i32
    %c0_i32_1 = arith.constant 0 : i32
    return %c0_i32, %c0_i32_0 : i32, i32
  }
  func.func @transform_5(%arg0: i32) -> (i32, i32) {
    %c0_i32 = arith.constant 0 : i32
    %c0_i32_0 = arith.constant 0 : i32
    %c0_i32_1 = arith.constant 0 : i32
    return %c0_i32, %c0_i32_0 : i32, i32
  }
  func.func @transform_6(%arg0: i32) -> (i32, i32) {
    %c0_i32 = arith.constant 0 : i32
    %c0_i32_0 = arith.constant 0 : i32
    %c0_i32_1 = arith.constant 0 : i32
    return %c0_i32, %c0_i32_0 : i32, i32
  }
  func.func @transform_7(%arg0: i32) -> (i32, i32) {
    %c0_i32 = arith.constant 0 : i32
    %c0_i32_0 = arith.constant 0 : i32
    return %arg0, %c0_i32 : i32, i32
  }
}

</mosaic_0001>

<llo_original>
// kernel: tpu_custom_call.1
$region0: #{tpu_custom_call.1}
  #allocation0 [shape = 'u32[]', space=smem, size = 0x4, offset = 0x4, fixed_abs, tag = 'smem constant byte address 0x4 - core index']
  #allocation1 [shape = 'u32[144,128]{1,0:T(1,128)}', space=vmem, size = 0x12000, scoped, tag = 'internal scratch']
  %s0 = inlined_call_operand.vmem [shape: f32[1,64], index: 0, kind: input, shape index: {}]
  %s1 = inlined_call_operand.vmem [shape: f32[64,32], index: 1, kind: input, shape index: {}]
  %s2 = inlined_call_operand.vmem [shape: f32[1,32], index: 2, kind: input, shape index: {}]
  %s3 = inlined_call_operand.vmem [shape: f32[32,16], index: 3, kind: input, shape index: {}]
  %s4 = inlined_call_operand.vmem [shape: f32[1,16], index: 4, kind: input, shape index: {}]
  %s5 = inlined_call_operand.vmem [shape: f32[16,64], index: 5, kind: input, shape index: {}]
  %s6 = inlined_call_operand.vmem [shape: f32[1,64], index: 6, kind: input, shape index: {}]
  %s7 = inlined_call_operand.hbm [shape: f32[1,64], index: 7, kind: output, shape index: {}]
  %s8 = sld [smem:[#allocation0]]
  $region38: #{tpu_custom_call.1} parent=0
    _
  %s10 = ssub.s32 1, %s8
  %s11 = scalar_select 0, %s10, %s8
  $region1: #{tpu_custom_call.1} parent=0
    #allocation2 [shape = 'u8[512]{0}', space=vmem, size = 0x400, scoped, tag = 'output window, operand 0, single buffered']
    #allocation3 [shape = 's32[1]{0}', space=sflag, size = 0x4, scoped, tag = 'scoped memory for tpu_custom_call.1']
    %12 = vsyncpa [#allocation3], 0
    // Predicated region
    $region2: #{tpu_custom_call.1} parent=1 // pred_check
      _
    $region3: #{tpu_custom_call.1} parent=1 // pred_check_branch
      %14 = sbr.rel (0) target = $region5
    $region4: #{tpu_custom_call.1} parent=1 // pred_region
      _
    $region5: #{tpu_custom_call.1} parent=1 // pred_fallthru
      _
    // Predicated region
    $region6: #{tpu_custom_call.1} parent=1 // pred_check
      _
    $region7: #{tpu_custom_call.1} parent=1 // pred_check_branch
      %16 = sbr.rel (0) target = $region9
    $region8: #{tpu_custom_call.1} parent=1 // pred_region
      _
    $region9: #{tpu_custom_call.1} parent=1 // pred_fallthru
      _
    // Predicated region
    $region10: #{tpu_custom_call.1} parent=1 // pred_check
      _
    $region11: #{tpu_custom_call.1} parent=1 // pred_check_branch
      %18 = sbr.rel (0) target = $region13
    $region12: #{tpu_custom_call.1} parent=1 // pred_region
      _
    $region13: #{tpu_custom_call.1} parent=1 // pred_fallthru
      _
    // Predicated region
    $region14: #{tpu_custom_call.1} parent=1 // pred_check
      _
    $region15: #{tpu_custom_call.1} parent=1 // pred_check_branch
      %20 = sbr.rel (0) target = $region17
    $region16: #{tpu_custom_call.1} parent=1 // pred_region
      _
    $region17: #{tpu_custom_call.1} parent=1 // pred_fallthru
      _
    // Predicated region
    $region18: #{tpu_custom_call.1} parent=1 // pred_check
      _
    $region19: #{tpu_custom_call.1} parent=1 // pred_check_branch
      %22 = sbr.rel (0) target = $region21
    $region20: #{tpu_custom_call.1} parent=1 // pred_region
      _
    $region21: #{tpu_custom_call.1} parent=1 // pred_fallthru
      _
    // Predicated region
    $region22: #{tpu_custom_call.1} parent=1 // pred_check
      _
    $region23: #{tpu_custom_call.1} parent=1 // pred_check_branch
      %24 = sbr.rel (0) target = $region25
    $region24: #{tpu_custom_call.1} parent=1 // pred_region
      _
    $region25: #{tpu_custom_call.1} parent=1 // pred_fallthru
      _
    // Predicated region
    $region26: #{tpu_custom_call.1} parent=1 // pred_check
      _
    $region27: #{tpu_custom_call.1} parent=1 // pred_check_branch
      %26 = sbr.rel (0) target = $region29
    $region28: #{tpu_custom_call.1} parent=1 // pred_region
      _
    $region29: #{tpu_custom_call.1} parent=1 // pred_fallthru
      _
    %v27 = vld [vmem:[%s0] sm:$0x1]
    %v28 = vld [vmem:[%s1] sm:$0xff]
    %v29 = vld [vmem:[%s1 + $0x8] sm:$0xff]
    %v30 = vld [vmem:[%s1 + $0x10] sm:$0xff]
    %v31 = vld [vmem:[%s1 + $0x18] sm:$0xff]
    %v32 = vld [vmem:[%s1 + $0x20] sm:$0xff]
    %v33 = vld [vmem:[%s1 + $0x28] sm:$0xff]
    %v34 = vld [vmem:[%s1 + $0x30] sm:$0xff]
    %v35 = vld [vmem:[%s1 + $0x38] sm:$0xff]
    %v36 = vld [vmem:[%s2] sm:$0x1]
    %vm37 = vcmask 523264
    %v39 = vsel %vm37, %v27, 0
    %41 = vmatprep.subr.mxu0 0.0
    %42 = vmatpush1.msra.mxu0 0.0
    %43 = vmatprep.subr.mxu0 0.0
    %44 = vmatpush1.msra.mxu0 0.0
    %45 = vmatprep.subr.mxu0 0.0
    %46 = vmatpush1.msra.mxu0 0.0
    %47 = vmatprep.subr.mxu0 0.0
    %48 = vmatpush1.msra.mxu0 0.0
    %49 = vmatprep.subr.mxu0 0.0
    %50 = vmatpush1.msra.mxu0 0.0
    %51 = vmatprep.subr.mxu0 0.0
    %52 = vmatpush1.msra.mxu0 0.0
    %53 = vmatprep.subr.mxu0 0.0
    %54 = vmatpush1.msra.mxu0 0.0
    %55 = vmatprep.subr.mxu0 0.0
    %56 = vmatpush1.msra.mxu0 0.0
    %57 = vmatprep.subr.mxu0 0.0
    %58 = vmatpush1.msra.mxu0 %v35
    %59 = vmatprep.subr.mxu0 0.0
    %60 = vmatpush1.msra.mxu0 %v34
    %61 = vmatprep.subr.mxu0 0.0
    %62 = vmatpush1.msra.mxu0 %v33
    %63 = vmatprep.subr.mxu0 0.0
    %64 = vmatpush1.msra.mxu0 %v32
    %65 = vmatprep.subr.mxu0 0.0
    %66 = vmatpush1.msra.mxu0 %v31
    %67 = vmatprep.subr.mxu0 0.0
    %68 = vmatpush1.msra.mxu0 %v30
    %69 = vmatprep.subr.mxu0 0.0
    %70 = vmatpush1.msra.mxu0 %v29
    %71 = vmatprep.subr.mxu0 0.0
    %72 = vmatpush1.msra.mxu0 %v28
    %73 = vmatprep.subr.mxu0 0.0
    %74 = vmatpush2.msra.mxu0 0.0
    %75 = vmatprep.subr.mxu0 0.0
    %76 = vmatpush2.msra.mxu0 0.0
    %77 = vmatprep.subr.mxu0 0.0
    %78 = vmatpush2.msra.mxu0 0.0
    %79 = vmatprep.subr.mxu0 0.0
    %80 = vmatpush2.msra.mxu0 0.0
    %81 = vmatprep.subr.mxu0 0.0
    %82 = vmatpush2.msra.mxu0 0.0
    %83 = vmatprep.subr.mxu0 0.0
    %84 = vmatpush2.msra.mxu0 0.0
    %85 = vmatprep.subr.mxu0 0.0
    %86 = vmatpush2.msra.mxu0 0.0
    %87 = vmatprep.subr.mxu0 0.0
    %88 = vmatpush2.msra.mxu0 0.0
    %89 = vmatprep.subr.mxu0 0.0
    %90 = vmatpush2.msra.mxu0 0.0
    %91 = vmatprep.subr.mxu0 0.0
    %92 = vmatpush2.msra.mxu0 0.0
    %93 = vmatprep.subr.mxu0 0.0
    %94 = vmatpush2.msra.mxu0 0.0
    %95 = vmatprep.subr.mxu0 0.0
    %96 = vmatpush2.msra.mxu0 0.0
    %97 = vmatprep.subr.mxu0 0.0
    %98 = vmatpush2.msra.mxu0 0.0
    %99 = vmatprep.subr.mxu0 0.0
    %100 = vmatpush2.msra.mxu0 0.0
    %101 = vmatprep.subr.mxu0 0.0
    %102 = vmatpush2.msra.mxu0 0.0
    %103 = vmatprep.subr.mxu0 0.0
    %104 = vmatpush2.msra.mxu0 0.0
    %105 = vmatprep.mubr.f32.mxu0 0.0
    %106 = vmatmul.mubr.f32.gmra.mxu0 %v39
    %v107 = vpop.f32.mrf.mxu0
    %v108 = vadd.f32 %v36, %v107
    %v109 = vpop.f32.mrf.mxu0
    %110 = vdwg.mxu0
    %v111 = vmax.f32 %v108, 0.0
    %v112 = vld [vmem:[%s3] sm:$0xff]
    %v113 = vld [vmem:[%s3 + $0x8] sm:$0xff]
    %v114 = vld [vmem:[%s3 + $0x10] sm:$0xff]
    %v115 = vld [vmem:[%s3 + $0x18] sm:$0xff]
    %v116 = vld [vmem:[%s4] sm:$0x1]
    %vm117 = vcmask 261120
    %v119 = vsel %vm117, %v111, 0
    %121 = vmatprep.subr.mxu0 0.0
    %122 = vmatpush1.msra.mxu0 0.0
    %123 = vmatprep.subr.mxu0 0.0
    %124 = vmatpush1.msra.mxu0 0.0
    %125 = vmatprep.subr.mxu0 0.0
    %126 = vmatpush1.msra.mxu0 0.0
    %127 = vmatprep.subr.mxu0 0.0
    %128 = vmatpush1.msra.mxu0 0.0
    %129 = vmatprep.subr.mxu0 0.0
    %130 = vmatpush1.msra.mxu0 0.0
    %131 = vmatprep.subr.mxu0 0.0
    %132 = vmatpush1.msra.mxu0 0.0
    %133 = vmatprep.subr.mxu0 0.0
    %134 = vmatpush1.msra.mxu0 0.0
    %135 = vmatprep.subr.mxu0 0.0
    %136 = vmatpush1.msra.mxu0 0.0
    %137 = vmatprep.subr.mxu0 0.0
    %138 = vmatpush1.msra.mxu0 0.0
    %139 = vmatprep.subr.mxu0 0.0
    %140 = vmatpush1.msra.mxu0 0.0
    %141 = vmatprep.subr.mxu0 0.0
    %142 = vmatpush1.msra.mxu0 0.0
    %143 = vmatprep.subr.mxu0 0.0
    %144 = vmatpush1.msra.mxu0 0.0
    %145 = vmatprep.subr.mxu0 0.0
    %146 = vmatpush1.msra.mxu0 %v115
    %147 = vmatprep.subr.mxu0 0.0
    %148 = vmatpush1.msra.mxu0 %v114
    %149 = vmatprep.subr.mxu0 0.0
    %150 = vmatpush1.msra.mxu0 %v113
    %151 = vmatprep.subr.mxu0 0.0
    %152 = vmatpush1.msra.mxu0 %v112
    %153 = vmatprep.subr.mxu0 0.0
    %154 = vmatpush2.msra.mxu0 0.0
    %155 = vmatprep.subr.mxu0 0.0
    %156 = vmatpush2.msra.mxu0 0.0
    %157 = vmatprep.subr.mxu0 0.0
    %158 = vmatpush2.msra.mxu0 0.0
    %159 = vmatprep.subr.mxu0 0.0
    %160 = vmatpush2.msra.mxu0 0.0
    %161 = vmatprep.subr.mxu0 0.0
    %162 = vmatpush2.msra.mxu0 0.0
    %163 = vmatprep.subr.mxu0 0.0
    %164 = vmatpush2.msra.mxu0 0.0
    %165 = vmatprep.subr.mxu0 0.0
    %166 = vmatpush2.msra.mxu0 0.0
    %167 = vmatprep.subr.mxu0 0.0
    %168 = vmatpush2.msra.mxu0 0.0
    %169 = vmatprep.subr.mxu0 0.0
    %170 = vmatpush2.msra.mxu0 0.0
    %171 = vmatprep.subr.mxu0 0.0
    %172 = vmatpush2.msra.mxu0 0.0
    %173 = vmatprep.subr.mxu0 0.0
    %174 = vmatpush2.msra.mxu0 0.0
    %175 = vmatprep.subr.mxu0 0.0
    %176 = vmatpush2.msra.mxu0 0.0
    %177 = vmatprep.subr.mxu0 0.0
    %178 = vmatpush2.msra.mxu0 0.0
    %179 = vmatprep.subr.mxu0 0.0
    %180 = vmatpush2.msra.mxu0 0.0
    %181 = vmatprep.subr.mxu0 0.0
    %182 = vmatpush2.msra.mxu0 0.0
    %183 = vmatprep.subr.mxu0 0.0
    %184 = vmatpush2.msra.mxu0 0.0
    %185 = vmatprep.mubr.f32.mxu0 0.0
    %186 = vmatmul.mubr.f32.gmra.mxu0 %v119
    %v187 = vpop.f32.mrf.mxu0
    %v188 = vadd.f32 %v116, %v187
    %v189 = vpop.f32.mrf.mxu0
    %190 = vdwg.mxu0
    %v191 = vmax.f32 %v188, 0.0
    %v192 = vld [vmem:[%s5] sm:$0xff]
    %v193 = vld [vmem:[%s5 + $0x8] sm:$0xff]
    %v194 = vld [vmem:[%s6] sm:$0x1]
    %vm195 = vcmask 130048
    %v197 = vsel %vm195, %v191, 0
    %199 = vmatprep.subr.mxu0 0.0
    %200 = vmatpush1.msra.mxu0 0.0
    %201 = vmatprep.subr.mxu0 0.0
    %202 = vmatpush1.msra.mxu0 0.0
    %203 = vmatprep.subr.mxu0 0.0
    %204 = vmatpush1.msra.mxu0 0.0
    %205 = vmatprep.subr.mxu0 0.0
    %206 = vmatpush1.msra.mxu0 0.0
    %207 = vmatprep.subr.mxu0 0.0
    %208 = vmatpush1.msra.mxu0 0.0
    %209 = vmatprep.subr.mxu0 0.0
    %210 = vmatpush1.msra.mxu0 0.0
    %211 = vmatprep.subr.mxu0 0.0
    %212 = vmatpush1.msra.mxu0 0.0
    %213 = vmatprep.subr.mxu0 0.0
    %214 = vmatpush1.msra.mxu0 0.0
    %215 = vmatprep.subr.mxu0 0.0
    %216 = vmatpush1.msra.mxu0 0.0
    %217 = vmatprep.subr.mxu0 0.0
    %218 = vmatpush1.msra.mxu0 0.0
    %219 = vmatprep.subr.mxu0 0.0
    %220 = vmatpush1.msra.mxu0 0.0
    %221 = vmatprep.subr.mxu0 0.0
    %222 = vmatpush1.msra.mxu0 0.0
    %223 = vmatprep.subr.mxu0 0.0
    %224 = vmatpush1.msra.mxu0 0.0
    %225 = vmatprep.subr.mxu0 0.0
    %226 = vmatpush1.msra.mxu0 0.0
    %227 = vmatprep.subr.mxu0 0.0
    %228 = vmatpush1.msra.mxu0 %v193
    %229 = vmatprep.subr.mxu0 0.0
    %230 = vmatpush1.msra.mxu0 %v192
    %231 = vmatprep.subr.mxu0 0.0
    %232 = vmatpush2.msra.mxu0 0.0
    %233 = vmatprep.subr.mxu0 0.0
    %234 = vmatpush2.msra.mxu0 0.0
    %235 = vmatprep.subr.mxu0 0.0
    %236 = vmatpush2.msra.mxu0 0.0
    %237 = vmatprep.subr.mxu0 0.0
    %238 = vmatpush2.msra.mxu0 0.0
    %239 = vmatprep.subr.mxu0 0.0
    %240 = vmatpush2.msra.mxu0 0.0
    %241 = vmatprep.subr.mxu0 0.0
    %242 = vmatpush2.msra.mxu0 0.0
    %243 = vmatprep.subr.mxu0 0.0
    %244 = vmatpush2.msra.mxu0 0.0
    %245 = vmatprep.subr.mxu0 0.0
    %246 = vmatpush2.msra.mxu0 0.0
    %247 = vmatprep.subr.mxu0 0.0
    %248 = vmatpush2.msra.mxu0 0.0
    %249 = vmatprep.subr.mxu0 0.0
    %250 = vmatpush2.msra.mxu0 0.0
    %251 = vmatprep.subr.mxu0 0.0
    %252 = vmatpush2.msra.mxu0 0.0
    %253 = vmatprep.subr.mxu0 0.0
    %254 = vmatpush2.msra.mxu0 0.0
    %255 = vmatprep.subr.mxu0 0.0
    %256 = vmatpush2.msra.mxu0 0.0
    %257 = vmatprep.subr.mxu0 0.0
    %258 = vmatpush2.msra.mxu0 0.0
    %259 = vmatprep.subr.mxu0 0.0
    %260 = vmatpush2.msra.mxu0 0.0
    %261 = vmatprep.subr.mxu0 0.0
    %262 = vmatpush2.msra.mxu0 0.0
    %263 = vmatprep.mubr.f32.mxu0 0.0
    %264 = vmatmul.mubr.f32.gmra.mxu0 %v197
    %v265 = vpop.f32.mrf.mxu0
    %v266 = vadd.f32 %v194, %v265
    %v267 = vpop.f32.mrf.mxu0
    %268 = vdwg.mxu0
    %vm269 = vcmask 516096
    %270 = vst.msk [vmem:[#allocation2] sm:$0x1] %vm269, %v266
    // Predicated region
    $region30: #{tpu_custom_call.1} parent=1 // pred_check
      _
    $region31: #{tpu_custom_call.1} parent=1 // pred_check_branch
      %272 = sbr.rel (0) target = $region33
    $region32: #{tpu_custom_call.1} parent=1 // pred_region
      %s274 = ssub.s32 16, 16
      %275 = vsyncadd [#allocation3], %s274
      %s277 = sshll.u32 [#allocation2], 4
      %s278 = int_to_ptr.vmem [resolvable:$true] %s277
      %280 = dma.vmem_to_hbm [thread:$0]  %s278, 16, %s7, [#allocation3]
    $region33: #{tpu_custom_call.1} parent=1 // pred_fallthru
      _
    // Predicated region
    $region34: #{tpu_custom_call.1} parent=1 // pred_check
      _
    $region35: #{tpu_custom_call.1} parent=1 // pred_check_branch
      %282 = sbr.rel (0) target = $region37
    $region36: #{tpu_custom_call.1} parent=1 // pred_region
      %283 = dma.done [#allocation3], 16
    $region37: #{tpu_custom_call.1} parent=1 // pred_fallthru
      _
    %284 = vsyncpa [#allocation3], 1

</llo_original>
